<compile_context>
chip_gen: v7x
topology: tpu7x:2x2x1
jax: 0.10.0
libtpu: 0.0.40
codegen_flags: <defaults>
</compile_context>

<pallas_src>
import functools

import jax
import jax.numpy as jnp
from jax.experimental import pallas as pl
from jax.experimental.pallas import tpu as pltpu


def _round_up(x: int, m: int) -> int:
    return ((x + m - 1) // m) * m


def _bcnet_kernel(v_ref, q_ref, wv_ref, bv_ref, wq_ref, bq_ref,
                  hmat_ref, hbias_ref, o_ref, *, compute_dtype):
    """One batch tile per grid step.

    Refs (VMEM tiles):
      v_ref    : (Bt, Nv, v_dim)
      q_ref    : (Bt, Nq, q_dim)
      wv_ref   : (v_dim, Kp)        effective weight-normed v_net weight (padded K)
      bv_ref   : (1, Kp)
      wq_ref   : (q_dim, Kp)
      bq_ref   : (1, Kp)
      hmat_ref : (h_out, Kp)        h_mat squeezed from (1, h_out, 1, K), K padded
      hbias_ref: (h_out*Nv, 1)      h_bias pre-broadcast over the fused row axis
      o_ref    : (Bt, h_out*Nv, Nq)
    """
    bt, nv, dv = v_ref.shape
    _, nq, dq = q_ref.shape
    h_out, kp = hmat_ref.shape
    f32 = jnp.float32

    # Flatten batch rows into the MXU M dimension for the FCNet matmuls.
    v2d = v_ref[...].reshape(bt * nv, dv).astype(compute_dtype)
    q2d = q_ref[...].reshape(bt * nq, dq).astype(compute_dtype)
    wv = wv_ref[...].astype(compute_dtype)
    wq = wq_ref[...].astype(compute_dtype)
    bv = bv_ref[...].astype(f32)        # (1, Kp)
    bq = bq_ref[...].astype(f32)        # (1, Kp)
    hmat = hmat_ref[...].astype(f32)    # (h_out, Kp)
    hbias = hbias_ref[...].astype(f32)  # (h_out*Nv, 1)

    # FCNet: (folded) weight-normed Linear + ReLU; dropout = identity at eval.
    v_feat = jnp.maximum(
        jnp.dot(v2d, wv, preferred_element_type=f32) + bv, 0.0)   # (Bt*Nv, Kp)
    q_feat = jnp.maximum(
        jnp.dot(q2d, wq, preferred_element_type=f32) + bq, 0.0)   # (Bt*Nq, Kp)

    # logits[b, g*Nv + i, j] = sum_k v_feat[b,i,k] * h_mat[g,k] * q_feat[b,j,k]
    # Fuse all glimpses into one (h_out*Nv, Kp) x (Kp, Nq) MXU matmul per batch
    # element (batched dot_general over b), instead of h_out tiny matmuls.
    v_scaled = (v_feat.reshape(bt, 1, nv, kp) *
                hmat.reshape(1, h_out, 1, kp)).reshape(bt, h_out * nv, kp)
    q3 = q_feat.reshape(bt, nq, kp)
    logits = jax.lax.dot_general(
        v_scaled.astype(compute_dtype), q3.astype(compute_dtype),
        dimension_numbers=(((2,), (2,)), ((0,), (0,))),
        preferred_element_type=f32)                     # (Bt, h_out*Nv, Nq)

    # Single slab store (+ broadcast bias), no per-glimpse masked stores.
    o_ref[...] = (logits + hbias[None, :, :]).astype(o_ref.dtype)


def bcnet_forward(v, q, wv, bv, wq, bq, hmat, hbias, *,
                  batch_tile: int = 8,
                  compute_dtype=jnp.float32,
                  out_dtype=jnp.float32):
    """Pallas BCNet forward (h_out <= c branch).  Returns (B, h_out, Nv, Nq).

    compute_dtype=jnp.bfloat16 uses bf16 MXU operands with f32 accumulation
    (recommended on v6e/v7x if the accuracy trade-off is acceptable);
    out_dtype=jnp.bfloat16 halves the output HBM writeback.
    """
    B, Nv, v_dim = v.shape
    _, Nq, q_dim = q.shape
    h_out, K = hmat.shape
    assert wv.shape == (v_dim, K) and wq.shape == (q_dim, K)

    # ---- Wrapper-side layout prep (exact; padded K columns are inert). ----
    K_pad = _round_up(K, 128)
    if K_pad != K:
        padk = K_pad - K
        wv = jnp.pad(wv, ((0, 0), (0, padk)))
        wq = jnp.pad(wq, ((0, 0), (0, padk)))
        bv = jnp.pad(bv, ((0, 0), (0, padk)))
        bq = jnp.pad(bq, ((0, 0), (0, padk)))
        hmat = jnp.pad(hmat, ((0, 0), (0, padk)))

    # Pre-broadcast h_bias onto the fused (h_out*Nv, 1) row layout.
    hbias_rows = jnp.repeat(hbias.reshape(h_out), Nv).reshape(h_out * Nv, 1)

    # Largest divisor of B that is <= batch_tile: several batch elements per
    # grid step (amortizes per-step overhead, fills the MXU M dimension).
    # At realistic BAN sizes keep Bt*(h_out*Nv*Nq + Nv*v_dim + Nq*q_dim)*4B
    # (double buffered) well under scoped VMEM (32 MiB default; 64 MiB total
    # on v7x).
    bt = 1
    for d in range(1, min(B, max(1, batch_tile)) + 1):
        if B % d == 0:
            bt = d
    grid = (B // bt,)

    kernel = functools.partial(_bcnet_kernel, compute_dtype=compute_dtype)

    out = pl.pallas_call(
        kernel,
        out_shape=jax.ShapeDtypeStruct((B, h_out * Nv, Nq), out_dtype),
        grid_spec=pltpu.PrefetchScalarGridSpec(
            num_scalar_prefetch=0,
            grid=grid,
            in_specs=[
                pl.BlockSpec((bt, Nv, v_dim), lambda b: (b, 0, 0)),
                pl.BlockSpec((bt, Nq, q_dim), lambda b: (b, 0, 0)),
                pl.BlockSpec((v_dim, K_pad), lambda b: (0, 0)),
                pl.BlockSpec((1, K_pad), lambda b: (0, 0)),
                pl.BlockSpec((q_dim, K_pad), lambda b: (0, 0)),
                pl.BlockSpec((1, K_pad), lambda b: (0, 0)),
                pl.BlockSpec((h_out, K_pad), lambda b: (0, 0)),
                pl.BlockSpec((h_out * Nv, 1), lambda b: (0, 0)),
            ],
            out_specs=pl.BlockSpec((bt, h_out * Nv, Nq), lambda b: (b, 0, 0)),
        ),
        compiler_params=pltpu.CompilerParams(
            # Batch axis is fully independent -> shard across TCs on v7x.
            dimension_semantics=("parallel",)),
    )(v, q, wv, bv, wq, bq, hmat, hbias_rows)

    # Present the PyTorch layout; the kernel-side slab is (B, h_out*Nv, Nq).
    return out.reshape(B, h_out, Nv, Nq)


def bcnet_reference(v, q, wv, bv, wq, bq, hmat, hbias):
    """Pure-JAX reference mirroring the PyTorch forward (h_out <= c branch)."""
    v_ = jax.nn.relu(jnp.einsum('bnd,dk->bnk', v, wv) + bv)   # (B, Nv, K)
    q_ = jax.nn.relu(jnp.einsum('bnd,dk->bnk', q, wq) + bq)   # (B, Nq, K)
    h_ = v_[:, None, :, :] * hmat[None, :, None, :]           # (B, h_out, Nv, K)
    logits = jnp.einsum('bgik,bjk->bgij', h_, q_)             # (B, h_out, Nv, Nq)
    return logits + hbias[None, :, :, None]                   # h_bias broadcast


if __name__ == "__main__":
    # Small shapes consistent with the module: BCNet(v_dim, q_dim, h_dim, h_out, k=3)
    B, Nv, Nq = 2, 8, 8
    v_dim, q_dim, h_dim, k_factor, h_out = 32, 32, 32, 3, 2
    K = h_dim * k_factor

    key = jax.random.PRNGKey(0)
    ks = jax.random.split(key, 10)

    # weight_norm(Linear(v_dim, K), dim=None): W_eff = g * V / ||V||_F  (folded here, glue)
    Vv = jax.random.normal(ks[0], (K, v_dim), jnp.float32)
    gv = jnp.float32(1.5)
    wv = (gv * Vv / jnp.linalg.norm(Vv)).T                    # (v_dim, K)
    bv = jax.random.normal(ks[1], (1, K), jnp.float32)

    Vq = jax.random.normal(ks[2], (K, q_dim), jnp.float32)
    gq = jnp.float32(0.8)
    wq = (gq * Vq / jnp.linalg.norm(Vq)).T                    # (q_dim, K)
    bq = jax.random.normal(ks[3], (1, K), jnp.float32)

    # h_mat: (1, h_out, 1, K).normal_(), h_bias: (1, h_out, 1, 1).normal_() -> squeezed
    hmat = jax.random.normal(ks[4], (h_out, K), jnp.float32)
    hbias = jax.random.normal(ks[5], (h_out, 1), jnp.float32)

    v = jax.random.normal(ks[6], (B, Nv, v_dim), jnp.float32)
    q = jax.random.normal(ks[7], (B, Nq, q_dim), jnp.float32)

    out = bcnet_forward(v, q, wv, bv, wq, bq, hmat, hbias)
    out = jax.block_until_ready(out)

    ref = bcnet_reference(v, q, wv, bv, wq, bq, hmat, hbias)
    assert out.shape == (B, h_out, Nv, Nq), out.shape
    assert jnp.allclose(out, ref, atol=1e-4, rtol=1e-4), "mismatch vs reference"

    # TODO(synk): h_out is None / h_out > c branches and forward_with_weights
    # (AvgPool1d over k) are not exercised by this config.
    print("KERNEL_OK")
</pallas_src>

<mosaic_0001>
module attributes {stable_mosaic.version = 11 : i64} {
  func.func @_bcnet_kernel(%arg0: i32, %arg1: memref<2x8x32xf32, #tpu.memory_space<vmem>>, %arg2: memref<2x8x32xf32, #tpu.memory_space<vmem>>, %arg3: memref<32x128xf32, #tpu.memory_space<vmem>>, %arg4: memref<1x128xf32, #tpu.memory_space<vmem>>, %arg5: memref<32x128xf32, #tpu.memory_space<vmem>>, %arg6: memref<1x128xf32, #tpu.memory_space<vmem>>, %arg7: memref<2x128xf32, #tpu.memory_space<vmem>>, %arg8: memref<16x1xf32, #tpu.memory_space<vmem>>, %arg9: memref<2x16x8xf32, #tpu.memory_space<vmem>>) attributes {dimension_semantics = [#tpu.dimension_semantics<parallel>], iteration_bounds = array<i64: 1>, scalar_prefetch = 0 : i64, scratch_operands = 0 : i64, tpu.core_type = #tpu.core_type<tc>, window_params = [{transform_indices = @transform_0, window_bounds = array<i64: 2, 8, 32>}, {transform_indices = @transform_1, window_bounds = array<i64: 2, 8, 32>}, {pipeline_mode = #tpu.pipeline_mode<synchronous>, transform_indices = @transform_2, window_bounds = array<i64: 32, 128>}, {pipeline_mode = #tpu.pipeline_mode<synchronous>, transform_indices = @transform_3, window_bounds = array<i64: 1, 128>}, {pipeline_mode = #tpu.pipeline_mode<synchronous>, transform_indices = @transform_4, window_bounds = array<i64: 32, 128>}, {pipeline_mode = #tpu.pipeline_mode<synchronous>, transform_indices = @transform_5, window_bounds = array<i64: 1, 128>}, {pipeline_mode = #tpu.pipeline_mode<synchronous>, transform_indices = @transform_6, window_bounds = array<i64: 2, 128>}, {pipeline_mode = #tpu.pipeline_mode<synchronous>, transform_indices = @transform_7, window_bounds = array<i64: 16, 1>}, {transform_indices = @transform_8, window_bounds = array<i64: 2, 16, 8>}]} {
    %c0 = arith.constant 0 : index
    %c0_0 = arith.constant 0 : index
    %c0_1 = arith.constant 0 : index
    %0 = vector.load %arg1[%c0, %c0_0, %c0_1] : memref<2x8x32xf32, #tpu.memory_space<vmem>>, vector<2x8x32xf32>
    %1 = vector.shape_cast %0 : vector<2x8x32xf32> to vector<16x32xf32>
    %c0_2 = arith.constant 0 : index
    %c0_3 = arith.constant 0 : index
    %c0_4 = arith.constant 0 : index
    %2 = vector.load %arg2[%c0_2, %c0_3, %c0_4] : memref<2x8x32xf32, #tpu.memory_space<vmem>>, vector<2x8x32xf32>
    %3 = vector.shape_cast %2 : vector<2x8x32xf32> to vector<16x32xf32>
    %c0_5 = arith.constant 0 : index
    %c0_6 = arith.constant 0 : index
    %4 = vector.load %arg3[%c0_5, %c0_6] : memref<32x128xf32, #tpu.memory_space<vmem>>, vector<32x128xf32>
    %c0_7 = arith.constant 0 : index
    %c0_8 = arith.constant 0 : index
    %5 = vector.load %arg5[%c0_7, %c0_8] : memref<32x128xf32, #tpu.memory_space<vmem>>, vector<32x128xf32>
    %c0_9 = arith.constant 0 : index
    %c0_10 = arith.constant 0 : index
    %6 = vector.load %arg4[%c0_9, %c0_10] : memref<1x128xf32, #tpu.memory_space<vmem>>, vector<1x128xf32>
    %c0_11 = arith.constant 0 : index
    %c0_12 = arith.constant 0 : index
    %7 = vector.load %arg6[%c0_11, %c0_12] : memref<1x128xf32, #tpu.memory_space<vmem>>, vector<1x128xf32>
    %c0_13 = arith.constant 0 : index
    %c0_14 = arith.constant 0 : index
    %8 = vector.load %arg7[%c0_13, %c0_14] : memref<2x128xf32, #tpu.memory_space<vmem>>, vector<2x128xf32>
    %c0_15 = arith.constant 0 : index
    %c0_16 = arith.constant 0 : index
    %9 = vector.load %arg8[%c0_15, %c0_16] : memref<16x1xf32, #tpu.memory_space<vmem>>, vector<16x1xf32>
    %cst = arith.constant dense<0.000000e+00> : vector<16x128xf32>
    %10 = tpu.matmul %1, %4, %cst {dimension_numbers = #tpu.dot_dimension_numbers<[1], [0], [0], [1], [0, 0, 1, 1], [], []>} : vector<16x32xf32>, vector<32x128xf32>, vector<16x128xf32> -> vector<16x128xf32>
    %11 = vector.broadcast %6 : vector<1x128xf32> to vector<16x128xf32>
    %12 = arith.addf %10, %11 : vector<16x128xf32>
    %cst_17 = arith.constant 0.000000e+00 : f32
    %13 = vector.broadcast %cst_17 : f32 to vector<16x128xf32>
    %14 = arith.maximumf %12, %13 : vector<16x128xf32>
    %cst_18 = arith.constant dense<0.000000e+00> : vector<16x128xf32>
    %15 = tpu.matmul %3, %5, %cst_18 {dimension_numbers = #tpu.dot_dimension_numbers<[1], [0], [0], [1], [0, 0, 1, 1], [], []>} : vector<16x32xf32>, vector<32x128xf32>, vector<16x128xf32> -> vector<16x128xf32>
    %16 = vector.broadcast %7 : vector<1x128xf32> to vector<16x128xf32>
    %17 = arith.addf %15, %16 : vector<16x128xf32>
    %cst_19 = arith.constant 0.000000e+00 : f32
    %18 = vector.broadcast %cst_19 : f32 to vector<16x128xf32>
    %19 = arith.maximumf %17, %18 : vector<16x128xf32>
    %20 = vector.shape_cast %14 : vector<16x128xf32> to vector<2x1x8x128xf32>
    %21 = vector.shape_cast %8 : vector<2x128xf32> to vector<1x2x1x128xf32>
    %22 = vector.broadcast %20 : vector<2x1x8x128xf32> to vector<2x2x8x128xf32>
    %23 = vector.broadcast %21 : vector<1x2x1x128xf32> to vector<2x2x8x128xf32>
    %24 = arith.mulf %22, %23 : vector<2x2x8x128xf32>
    %25 = vector.shape_cast %24 : vector<2x2x8x128xf32> to vector<2x16x128xf32>
    %26 = vector.shape_cast %19 : vector<16x128xf32> to vector<2x8x128xf32>
    %cst_20 = arith.constant dense<0.000000e+00> : vector<2x16x8xf32>
    %27 = tpu.matmul %25, %26, %cst_20 {dimension_numbers = #tpu.dot_dimension_numbers<[2], [2], [1], [1], [0, 0, 0, 1, 1, 1], [0], [0]>} : vector<2x16x128xf32>, vector<2x8x128xf32>, vector<2x16x8xf32> -> vector<2x16x8xf32>
    %28 = vector.shape_cast %9 : vector<16x1xf32> to vector<1x16x1xf32>
    %29 = vector.broadcast %28 : vector<1x16x1xf32> to vector<2x16x8xf32>
    %30 = arith.addf %27, %29 : vector<2x16x8xf32>
    %c0_21 = arith.constant 0 : index
    %c0_22 = arith.constant 0 : index
    %c0_23 = arith.constant 0 : index
    %31 = vector.load %arg9[%c0_21, %c0_22, %c0_23] : memref<2x16x8xf32, #tpu.memory_space<vmem>>, vector<2x16x8xf32>
    tpu.vector_store %arg9[%c0_21, %c0_22, %c0_23], %30 {strides = array<i32>} : memref<2x16x8xf32, #tpu.memory_space<vmem>>, vector<2x16x8xf32>,
    return
  }
  func.func @transform_0(%arg0: i32) -> (i32, i32, i32) {
    %c0_i32 = arith.constant 0 : i32
    %c0_i32_0 = arith.constant 0 : i32
    %c0_i32_1 = arith.constant 0 : i32
    return %arg0, %c0_i32, %c0_i32_0 : i32, i32, i32
  }
  func.func @transform_1(%arg0: i32) -> (i32, i32, i32) {
    %c0_i32 = arith.constant 0 : i32
    %c0_i32_0 = arith.constant 0 : i32
    %c0_i32_1 = arith.constant 0 : i32
    return %arg0, %c0_i32, %c0_i32_0 : i32, i32, i32
  }
  func.func @transform_2(%arg0: i32) -> (i32, i32) {
    %c0_i32 = arith.constant 0 : i32
    %c0_i32_0 = arith.constant 0 : i32
    %c0_i32_1 = arith.constant 0 : i32
    return %c0_i32, %c0_i32_0 : i32, i32
  }
  func.func @transform_3(%arg0: i32) -> (i32, i32) {
    %c0_i32 = arith.constant 0 : i32
    %c0_i32_0 = arith.constant 0 : i32
    %c0_i32_1 = arith.constant 0 : i32
    return %c0_i32, %c0_i32_0 : i32, i32
  }
  func.func @transform_4(%arg0: i32) -> (i32, i32) {
    %c0_i32 = arith.constant 0 : i32
    %c0_i32_0 = arith.constant 0 : i32
    %c0_i32_1 = arith.constant 0 : i32
    return %c0_i32, %c0_i32_0 : i32, i32
  }
  func.func @transform_5(%arg0: i32) -> (i32, i32) {
    %c0_i32 = arith.constant 0 : i32
    %c0_i32_0 = arith.constant 0 : i32
    %c0_i32_1 = arith.constant 0 : i32
    return %c0_i32, %c0_i32_0 : i32, i32
  }
  func.func @transform_6(%arg0: i32) -> (i32, i32) {
    %c0_i32 = arith.constant 0 : i32
    %c0_i32_0 = arith.constant 0 : i32
    %c0_i32_1 = arith.constant 0 : i32
    return %c0_i32, %c0_i32_0 : i32, i32
  }
  func.func @transform_7(%arg0: i32) -> (i32, i32) {
    %c0_i32 = arith.constant 0 : i32
    %c0_i32_0 = arith.constant 0 : i32
    %c0_i32_1 = arith.constant 0 : i32
    return %c0_i32, %c0_i32_0 : i32, i32
  }
  func.func @transform_8(%arg0: i32) -> (i32, i32, i32) {
    %c0_i32 = arith.constant 0 : i32
    %c0_i32_0 = arith.constant 0 : i32
    %c0_i32_1 = arith.constant 0 : i32
    return %arg0, %c0_i32, %c0_i32_0 : i32, i32, i32
  }
}

</mosaic_0001>

<llo_original>
// kernel: tpu_custom_call.1
$region0: #{tpu_custom_call.1}
  #allocation0 [shape = 'u32[]', space=smem, size = 0x4, offset = 0x4, fixed_abs, tag = 'smem constant byte address 0x4 - core index']
  #allocation1 [shape = 'u32[144,128]{1,0:T(1,128)}', space=vmem, size = 0x12000, scoped, tag = 'internal scratch']
  %s0 = inlined_call_operand.hbm [shape: f32[2,8,32], index: 0, kind: input, shape index: {}]
  %s1 = inlined_call_operand.hbm [shape: f32[2,8,32], index: 1, kind: input, shape index: {}]
  %s2 = inlined_call_operand.hbm [shape: f32[32,128], index: 2, kind: input, shape index: {}]
  %s3 = inlined_call_operand.hbm [shape: f32[1,128], index: 3, kind: input, shape index: {}]
  %s4 = inlined_call_operand.vmem [shape: f32[32,128], index: 4, kind: input, shape index: {}]
  %s5 = inlined_call_operand.vmem [shape: f32[1,128], index: 5, kind: input, shape index: {}]
  %s6 = inlined_call_operand.vmem [shape: f32[2,128], index: 6, kind: input, shape index: {}]
  %s7 = inlined_call_operand.vmem [shape: f32[16,1], index: 7, kind: input, shape index: {}]
  %s8 = inlined_call_operand.vmem [shape: f32[2,16,8], index: 8, kind: output, shape index: {}]
  %s9 = sld [smem:[#allocation0]]
  $region58: #{tpu_custom_call.1} parent=0
    _
  %s11 = ssub.s32 1, %s9
  %s12 = scalar_select 0, %s11, %s9
  $region1: #{tpu_custom_call.1} parent=0
    #allocation2 [shape = 'u8[8192]{0}', space=vmem, size = 0x2000, scoped, tag = 'input window, operand 0, single buffered']
    #allocation3 [shape = 's32[1]{0}', space=sflag, size = 0x4, scoped, tag = 'scoped memory for tpu_custom_call.1']
    #allocation4 [shape = 'u8[8192]{0}', space=vmem, size = 0x2000, scoped, tag = 'input window, operand 1, single buffered']
    #allocation5 [shape = 's32[1]{0}', space=sflag, size = 0x4, scoped, tag = 'scoped memory for tpu_custom_call.1']
    #allocation6 [shape = 'u8[16384]{0}', space=vmem, size = 0x4000, scoped, tag = 'input window, operand 2, single buffered']
    #allocation7 [shape = 'u8[512]{0}', space=vmem, size = 0x400, scoped, tag = 'input window, operand 3, single buffered']
    #allocation8 [shape = 's32[1]{0}', space=sflag, size = 0x4, scoped, tag = 'scoped memory for tpu_custom_call.1']
    %13 = vsyncpa [#allocation3], 0
    %14 = vsyncpa [#allocation5], 0
    %15 = vsyncpa [#allocation8], 0
    // Predicated region
    $region2: #{tpu_custom_call.1} parent=1 // pred_check
      _
    $region3: #{tpu_custom_call.1} parent=1 // pred_check_branch
      %17 = sbr.rel (0) target = $region5
    $region4: #{tpu_custom_call.1} parent=1 // pred_region
      %s19 = ssub.s32 256, 256
      %20 = vsyncadd [#allocation3], %s19
      %s21 = sshll.u32 [#allocation2], 4
      %s22 = int_to_ptr.vmem [resolvable:$true] %s21
      %27 = dma.hbm_to_vmem [thread:$0]  %s0, 256, %s22, [#allocation3], 128, 128, 8
    $region5: #{tpu_custom_call.1} parent=1 // pred_fallthru
      _
    // Predicated region
    $region6: #{tpu_custom_call.1} parent=1 // pred_check
      _
    $region7: #{tpu_custom_call.1} parent=1 // pred_check_branch
      %29 = sbr.rel (0) target = $region9
    $region8: #{tpu_custom_call.1} parent=1 // pred_region
      %s31 = ssub.s32 256, 256
      %32 = vsyncadd [#allocation5], %s31
      %s33 = sshll.u32 [#allocation4], 4
      %s34 = int_to_ptr.vmem [resolvable:$true] %s33
      %39 = dma.hbm_to_vmem [thread:$0]  %s1, 256, %s34, [#allocation5], 128, 128, 8
    $region9: #{tpu_custom_call.1} parent=1 // pred_fallthru
      _
    // Predicated region
    $region10: #{tpu_custom_call.1} parent=1 // pred_check
      _
    $region11: #{tpu_custom_call.1} parent=1 // pred_check_branch
      %41 = sbr.rel (0) target = $region13
    $region12: #{tpu_custom_call.1} parent=1 // pred_region
      %s43 = ssub.s32 512, 512
      %44 = vsyncadd [#allocation5], %s43
      %s45 = sshll.u32 [#allocation6], 4
      %s46 = int_to_ptr.vmem [resolvable:$true] %s45
      %51 = dma.hbm_to_vmem [thread:$0]  %s2, 512, %s46, [#allocation5], 128, 128, 8
    $region13: #{tpu_custom_call.1} parent=1 // pred_fallthru
      _
    // Predicated region
    $region14: #{tpu_custom_call.1} parent=1 // pred_check
      _
    $region15: #{tpu_custom_call.1} parent=1 // pred_check_branch
      %53 = sbr.rel (0) target = $region17
    $region16: #{tpu_custom_call.1} parent=1 // pred_region
      %s55 = ssub.s32 16, 16
      %56 = vsyncadd [#allocation8], %s55
      %s58 = sshll.u32 [#allocation7], 4
      %s59 = int_to_ptr.vmem [resolvable:$true] %s58
      %61 = dma.hbm_to_vmem [thread:$0]  %s3, 16, %s59, [#allocation8]
    $region17: #{tpu_custom_call.1} parent=1 // pred_fallthru
      _
    // Predicated region
    $region18: #{tpu_custom_call.1} parent=1 // pred_check
      _
    $region19: #{tpu_custom_call.1} parent=1 // pred_check_branch
      %63 = sbr.rel (0) target = $region21
    $region20: #{tpu_custom_call.1} parent=1 // pred_region
      _
    $region21: #{tpu_custom_call.1} parent=1 // pred_fallthru
      _
    // Predicated region
    $region22: #{tpu_custom_call.1} parent=1 // pred_check
      _
    $region23: #{tpu_custom_call.1} parent=1 // pred_check_branch
      %65 = sbr.rel (0) target = $region25
    $region24: #{tpu_custom_call.1} parent=1 // pred_region
      _
    $region25: #{tpu_custom_call.1} parent=1 // pred_fallthru
      _
    // Predicated region
    $region26: #{tpu_custom_call.1} parent=1 // pred_check
      _
    $region27: #{tpu_custom_call.1} parent=1 // pred_check_branch
      %67 = sbr.rel (0) target = $region29
    $region28: #{tpu_custom_call.1} parent=1 // pred_region
      _
    $region29: #{tpu_custom_call.1} parent=1 // pred_fallthru
      _
    // Predicated region
    $region30: #{tpu_custom_call.1} parent=1 // pred_check
      _
    $region31: #{tpu_custom_call.1} parent=1 // pred_check_branch
      %69 = sbr.rel (0) target = $region33
    $region32: #{tpu_custom_call.1} parent=1 // pred_region
      _
    $region33: #{tpu_custom_call.1} parent=1 // pred_fallthru
      _
    // Predicated region
    $region34: #{tpu_custom_call.1} parent=1 // pred_check
      _
    $region35: #{tpu_custom_call.1} parent=1 // pred_check_branch
      %71 = sbr.rel (0) target = $region37
    $region36: #{tpu_custom_call.1} parent=1 // pred_region
      %72 = dma.done [#allocation3], 256
    $region37: #{tpu_custom_call.1} parent=1 // pred_fallthru
      _
    // Predicated region
    $region38: #{tpu_custom_call.1} parent=1 // pred_check
      _
    $region39: #{tpu_custom_call.1} parent=1 // pred_check_branch
      %74 = sbr.rel (0) target = $region41
    $region40: #{tpu_custom_call.1} parent=1 // pred_region
      %75 = dma.done [#allocation5], 256
    $region41: #{tpu_custom_call.1} parent=1 // pred_fallthru
      _
    // Predicated region
    $region42: #{tpu_custom_call.1} parent=1 // pred_check
      _
    $region43: #{tpu_custom_call.1} parent=1 // pred_check_branch
      %77 = sbr.rel (0) target = $region45
    $region44: #{tpu_custom_call.1} parent=1 // pred_region
      %78 = dma.done [#allocation5], 512
    $region45: #{tpu_custom_call.1} parent=1 // pred_fallthru
      _
    // Predicated region
    $region46: #{tpu_custom_call.1} parent=1 // pred_check
      _
    $region47: #{tpu_custom_call.1} parent=1 // pred_check_branch
      %80 = sbr.rel (0) target = $region49
    $region48: #{tpu_custom_call.1} parent=1 // pred_region
      %81 = dma.done [#allocation8], 16
    $region49: #{tpu_custom_call.1} parent=1 // pred_fallthru
      _
    %v82 = vld [vmem:[#allocation2] sm:$0xff]
    %v83 = vld [vmem:[#allocation2 + $0x8] sm:$0xff]
    %v84 = vld [vmem:[#allocation4] sm:$0xff]
    %v85 = vld [vmem:[#allocation4 + $0x8] sm:$0xff]
    %v86 = vld [vmem:[#allocation6] sm:$0xff]
    %v87 = vld [vmem:[#allocation6 + $0x8] sm:$0xff]
    %v88 = vld [vmem:[#allocation6 + $0x10] sm:$0xff]
    %v89 = vld [vmem:[#allocation6 + $0x18] sm:$0xff]
    %v90 = vld [vmem:[%s4] sm:$0xff]
    %v91 = vld [vmem:[%s4 + $0x8] sm:$0xff]
    %v92 = vld [vmem:[%s4 + $0x10] sm:$0xff]
    %v93 = vld [vmem:[%s4 + $0x18] sm:$0xff]
    %v94 = vld [vmem:[#allocation7] sm:$0x1]
    %v95 = vld [vmem:[%s5] sm:$0x1]
    %v96 = vld [vmem:[%s6] sm:$0x3]
    %v97 = vld [vmem:[%s7] sm:$0xff]
    %v98 = vld [vmem:[%s7 + $0x8] sm:$0xff]
    %v100 = vlaneseq
    %v101 = vshrl.u32 %v100, 7
    %v102 = vsub.s32 0, %v101
    %v103 = vrot.slane %v94, %v102
    %vm105 = vcmask 261120
    %v107 = vsel %vm105, %v82, 0
    %v110 = vsel %vm105, %v83, 0
    %112 = vmatprep.subr.mxu0 0.0
    %113 = vmatpush1.msra.mxu0 %v86
    %114 = vmatprep.subr.mxu0 0.0
    %115 = vmatpush1.msra.mxu0 %v87
    %116 = vmatprep.subr.mxu0 0.0
    %117 = vmatpush1.msra.mxu0 %v88
    %118 = vmatprep.subr.mxu0 0.0
    %119 = vmatpush1.msra.mxu0 %v89
    %120 = vmatprep.subr.mxu0 0.0
    %121 = vmatpush1.msra.mxu0 0.0
    %122 = vmatprep.subr.mxu0 0.0
    %123 = vmatpush1.msra.mxu0 0.0
    %124 = vmatprep.subr.mxu0 0.0
    %125 = vmatpush1.msra.mxu0 0.0
    %126 = vmatprep.subr.mxu0 0.0
    %127 = vmatpush1.msra.mxu0 0.0
    %128 = vmatprep.subr.mxu0 0.0
    %129 = vmatpush1.msra.mxu0 0.0
    %130 = vmatprep.subr.mxu0 0.0
    %131 = vmatpush1.msra.mxu0 0.0
    %132 = vmatprep.subr.mxu0 0.0
    %133 = vmatpush1.msra.mxu0 0.0
    %134 = vmatprep.subr.mxu0 0.0
    %135 = vmatpush1.msra.mxu0 0.0
    %136 = vmatprep.subr.mxu0 0.0
    %137 = vmatpush1.msra.mxu0 0.0
    %138 = vmatprep.subr.mxu0 0.0
    %139 = vmatpush1.msra.mxu0 0.0
    %140 = vmatprep.subr.mxu0 0.0
    %141 = vmatpush1.msra.mxu0 0.0
    %142 = vmatprep.subr.mxu0 0.0
    %143 = vmatpush1.msra.mxu0 0.0
    %144 = vmatprep.subr.mxu0 0.0
    %145 = vmatpush1.msra.mxu0 0.0
    %146 = vmatprep.subr.mxu0 0.0
    %147 = vmatpush1.msra.mxu0 0.0
    %148 = vmatprep.subr.mxu0 0.0
    %149 = vmatpush1.msra.mxu0 0.0
    %150 = vmatprep.subr.mxu0 0.0
    %151 = vmatpush1.msra.mxu0 0.0
    %152 = vmatprep.subr.mxu0 0.0
    %153 = vmatpush1.msra.mxu0 0.0
    %154 = vmatprep.subr.mxu0 0.0
    %155 = vmatpush1.msra.mxu0 0.0
    %156 = vmatprep.subr.mxu0 0.0
    %157 = vmatpush1.msra.mxu0 0.0
    %158 = vmatprep.subr.mxu0 0.0
    %159 = vmatpush1.msra.mxu0 0.0
    %160 = vmatprep.subr.mxu0 0.0
    %161 = vmatpush1.msra.mxu0 0.0
    %162 = vmatprep.subr.mxu0 0.0
    %163 = vmatpush1.msra.mxu0 0.0
    %164 = vmatprep.subr.mxu0 0.0
    %165 = vmatpush1.msra.mxu0 0.0
    %166 = vmatprep.subr.mxu0 0.0
    %167 = vmatpush1.msra.mxu0 0.0
    %168 = vmatprep.subr.mxu0 0.0
    %169 = vmatpush1.msra.mxu0 0.0
    %170 = vmatprep.subr.mxu0 0.0
    %171 = vmatpush1.msra.mxu0 0.0
    %172 = vmatprep.subr.mxu0 0.0
    %173 = vmatpush1.msra.mxu0 0.0
    %174 = vmatprep.subr.mxu0 0.0
    %175 = vmatpush1.msra.mxu0 0.0
    %176 = vmatprep.mubr.f32.mxu0 0.0
    %177 = vmatmul.mubr.f32.gmra.mrb[0].mxu0 %v107
    %v178 = vpop.f32.mrb[0].mxu0
    %v179 = vadd.f32 %v103, %v178
    %v180 = vpop.f32.mrb[0].mxu0
    %181 = vmatprep.mubr.f32.mxu0 0.0
    %182 = vmatmul.mubr.f32.gmra.mrb[0].mxu0 %v110
    %v183 = vpop.f32.mrb[0].mxu0
    %v184 = vadd.f32 %v103, %v183
    %v185 = vpop.f32.mrb[0].mxu0
    %186 = vdwg.mxu0
    %v187 = vmax.f32 %v179, 0.0
    %v188 = vmax.f32 %v184, 0.0
    %v190 = vlaneseq
    %v191 = vshrl.u32 %v190, 7
    %v192 = vsub.s32 0, %v191
    %v193 = vrot.slane %v95, %v192
    %v196 = vsel %vm105, %v84, 0
    %v199 = vsel %vm105, %v85, 0
    %201 = vmatprep.subr.mxu0 0.0
    %202 = vmatpush1.msra.mxu0 %v90
    %203 = vmatprep.subr.mxu0 0.0
    %204 = vmatpush1.msra.mxu0 %v91
    %205 = vmatprep.subr.mxu0 0.0
    %206 = vmatpush1.msra.mxu0 %v92
    %207 = vmatprep.subr.mxu0 0.0
    %208 = vmatpush1.msra.mxu0 %v93
    %209 = vmatprep.subr.mxu0 0.0
    %210 = vmatpush1.msra.mxu0 0.0
    %211 = vmatprep.subr.mxu0 0.0
    %212 = vmatpush1.msra.mxu0 0.0
    %213 = vmatprep.subr.mxu0 0.0
    %214 = vmatpush1.msra.mxu0 0.0
    %215 = vmatprep.subr.mxu0 0.0
    %216 = vmatpush1.msra.mxu0 0.0
    %217 = vmatprep.subr.mxu0 0.0
    %218 = vmatpush1.msra.mxu0 0.0
    %219 = vmatprep.subr.mxu0 0.0
    %220 = vmatpush1.msra.mxu0 0.0
    %221 = vmatprep.subr.mxu0 0.0
    %222 = vmatpush1.msra.mxu0 0.0
    %223 = vmatprep.subr.mxu0 0.0
    %224 = vmatpush1.msra.mxu0 0.0
    %225 = vmatprep.subr.mxu0 0.0
    %226 = vmatpush1.msra.mxu0 0.0
    %227 = vmatprep.subr.mxu0 0.0
    %228 = vmatpush1.msra.mxu0 0.0
    %229 = vmatprep.subr.mxu0 0.0
    %230 = vmatpush1.msra.mxu0 0.0
    %231 = vmatprep.subr.mxu0 0.0
    %232 = vmatpush1.msra.mxu0 0.0
    %233 = vmatprep.subr.mxu0 0.0
    %234 = vmatpush1.msra.mxu0 0.0
    %235 = vmatprep.subr.mxu0 0.0
    %236 = vmatpush1.msra.mxu0 0.0
    %237 = vmatprep.subr.mxu0 0.0
    %238 = vmatpush1.msra.mxu0 0.0
    %239 = vmatprep.subr.mxu0 0.0
    %240 = vmatpush1.msra.mxu0 0.0
    %241 = vmatprep.subr.mxu0 0.0
    %242 = vmatpush1.msra.mxu0 0.0
    %243 = vmatprep.subr.mxu0 0.0
    %244 = vmatpush1.msra.mxu0 0.0
    %245 = vmatprep.subr.mxu0 0.0
    %246 = vmatpush1.msra.mxu0 0.0
    %247 = vmatprep.subr.mxu0 0.0
    %248 = vmatpush1.msra.mxu0 0.0
    %249 = vmatprep.subr.mxu0 0.0
    %250 = vmatpush1.msra.mxu0 0.0
    %251 = vmatprep.subr.mxu0 0.0
    %252 = vmatpush1.msra.mxu0 0.0
    %253 = vmatprep.subr.mxu0 0.0
    %254 = vmatpush1.msra.mxu0 0.0
    %255 = vmatprep.subr.mxu0 0.0
    %256 = vmatpush1.msra.mxu0 0.0
    %257 = vmatprep.subr.mxu0 0.0
    %258 = vmatpush1.msra.mxu0 0.0
    %259 = vmatprep.subr.mxu0 0.0
    %260 = vmatpush1.msra.mxu0 0.0
    %261 = vmatprep.subr.mxu0 0.0
    %262 = vmatpush1.msra.mxu0 0.0
    %263 = vmatprep.subr.mxu0 0.0
    %264 = vmatpush1.msra.mxu0 0.0
    %265 = vmatprep.mubr.f32.mxu0 0.0
    %266 = vmatmul.mubr.f32.gmra.mrb[0].mxu0 %v196
    %v267 = vpop.f32.mrb[0].mxu0
    %v268 = vadd.f32 %v193, %v267
    %v269 = vpop.f32.mrb[0].mxu0
    %270 = vmatprep.mubr.f32.mxu0 0.0
    %271 = vmatmul.mubr.f32.gmra.mrb[0].mxu0 %v199
    %v272 = vpop.f32.mrb[0].mxu0
    %v273 = vadd.f32 %v193, %v272
    %v274 = vpop.f32.mrb[0].mxu0
    %275 = vdwg.mxu0
    %v276 = vmax.f32 %v268, 0.0
    %v277 = vmax.f32 %v273, 0.0
    %v280 = vunpack.c.l.s4 1966171168
    %v281 = vunpack.c.0.s8 %v280
    %v282 = vlaneseq
    %v283 = vshrl.u32 %v282, 7
    %v284 = vsub.s32 %v281, %v283
    %v285 = vrot.slane %v96, %v284
    %v286 = vcombine.high %v285, %v285
    %v288 = vunpack.c.l.s4 1966171168
    %v289 = vunpack.c.0.s8 %v288
    %v290 = vlaneseq
    %v291 = vshrl.u32 %v290, 7
    %v292 = vsub.s32 %v289, %v291
    %v293 = vrot.slane %v285, %v292
    %v295 = vunpack.c.l.s4 1966171168
    %v296 = vunpack.c.0.s8 %v295
    %v297 = vlaneseq
    %v298 = vshrl.u32 %v297, 7
    %v299 = vsub.s32 %v296, %v298
    %v300 = vrot.slane %v286, %v299
    %v301 = vlaneseq
    %v302 = vshrl.u32 %v301, 7
    %v303 = vsub.s32 0, %v302
    %v304 = vrot.slane %v293, %v303
    %v305 = vlaneseq
    %v306 = vshrl.u32 %v305, 7
    %v307 = vsub.s32 0, %v306
    %v308 = vrot.slane %v300, %v307
    %v311 = vmul.f32 %v187, %v304
    %v312 = vmul.f32 %v187, %v308
    %v313 = vmul.f32 %v188, %v304
    %v314 = vmul.f32 %v188, %v308
    %316 = vset.pattern.permute.xlu0 0
    %317 = vperm.xlu0 %316, %v97
    %v318 = vpop.permute.xlu0 %317
    %321 = vset.pattern.permute.xlu0 0
    %322 = vperm.xlu0 %321, %v98
    %v323 = vpop.permute.xlu0 %322
    %325 = vmatprep.subr.mxu0 0.0
    %326 = vmatpush1.xpose.msra.mxu0 %v276
    %327 = vmatprep.subr.mxu0 0.0
    %328 = vmatpush1.xpose.msra.mxu0 0.0
    %329 = vmatprep.subr.mxu0 0.0
    %330 = vmatpush1.xpose.msra.mxu0 0.0
    %331 = vmatprep.subr.mxu0 0.0
    %332 = vmatpush1.xpose.msra.mxu0 0.0
    %333 = vmatprep.subr.mxu0 0.0
    %334 = vmatpush1.xpose.msra.mxu0 0.0
    %335 = vmatprep.subr.mxu0 0.0
    %336 = vmatpush1.xpose.msra.mxu0 0.0
    %337 = vmatprep.subr.mxu0 0.0
    %338 = vmatpush1.xpose.msra.mxu0 0.0
    %339 = vmatprep.subr.mxu0 0.0
    %340 = vmatpush1.xpose.msra.mxu0 0.0
    %341 = vmatprep.subr.mxu0 0.0
    %342 = vmatpush1.xpose.msra.mxu0 0.0
    %343 = vmatprep.subr.mxu0 0.0
    %344 = vmatpush1.xpose.msra.mxu0 0.0
    %345 = vmatprep.subr.mxu0 0.0
    %346 = vmatpush1.xpose.msra.mxu0 0.0
    %347 = vmatprep.subr.mxu0 0.0
    %348 = vmatpush1.xpose.msra.mxu0 0.0
    %349 = vmatprep.subr.mxu0 0.0
    %350 = vmatpush1.xpose.msra.mxu0 0.0
    %351 = vmatprep.subr.mxu0 0.0
    %352 = vmatpush1.xpose.msra.mxu0 0.0
    %353 = vmatprep.subr.mxu0 0.0
    %354 = vmatpush1.xpose.msra.mxu0 0.0
    %355 = vmatprep.subr.mxu0 0.0
    %356 = vmatpush1.xpose.msra.mxu0 0.0
    %357 = vmatprep.subr.mxu0 0.0
    %358 = vmatpush1.xpose.msra.mxu0 0.0
    %359 = vmatprep.subr.mxu0 0.0
    %360 = vmatpush1.xpose.msra.mxu0 0.0
    %361 = vmatprep.subr.mxu0 0.0
    %362 = vmatpush1.xpose.msra.mxu0 0.0
    %363 = vmatprep.subr.mxu0 0.0
    %364 = vmatpush1.xpose.msra.mxu0 0.0
    %365 = vmatprep.subr.mxu0 0.0
    %366 = vmatpush1.xpose.msra.mxu0 0.0
    %367 = vmatprep.subr.mxu0 0.0
    %368 = vmatpush1.xpose.msra.mxu0 0.0
    %369 = vmatprep.subr.mxu0 0.0
    %370 = vmatpush1.xpose.msra.mxu0 0.0
    %371 = vmatprep.subr.mxu0 0.0
    %372 = vmatpush1.xpose.msra.mxu0 0.0
    %373 = vmatprep.subr.mxu0 0.0
    %374 = vmatpush1.xpose.msra.mxu0 0.0
    %375 = vmatprep.subr.mxu0 0.0
    %376 = vmatpush1.xpose.msra.mxu0 0.0
    %377 = vmatprep.subr.mxu0 0.0
    %378 = vmatpush1.xpose.msra.mxu0 0.0
    %379 = vmatprep.subr.mxu0 0.0
    %380 = vmatpush1.xpose.msra.mxu0 0.0
    %381 = vmatprep.subr.mxu0 0.0
    %382 = vmatpush1.xpose.msra.mxu0 0.0
    %383 = vmatprep.subr.mxu0 0.0
    %384 = vmatpush1.xpose.msra.mxu0 0.0
    %385 = vmatprep.subr.mxu0 0.0
    %386 = vmatpush1.xpose.msra.mxu0 0.0
    %387 = vmatprep.subr.mxu0 0.0
    %388 = vmatpush1.xpose.msra.mxu0 0.0
    %389 = vmatprep.mubr.f32.mxu0 0.0
    %390 = vmatmul.mubr.f32.gmra.mrb[0].mxu0 %v311
    %v391 = vpop.f32.mrb[0].mxu0
    %v392 = vadd.f32 %v318, %v391
    %v393 = vpop.f32.mrb[0].mxu0
    %394 = vmatprep.mubr.f32.mxu0 0.0
    %395 = vmatmul.mubr.f32.gmra.mrb[0].mxu0 %v312
    %v396 = vpop.f32.mrb[0].mxu0
    %v397 = vadd.f32 %v323, %v396
    %v398 = vpop.f32.mrb[0].mxu0
    %399 = vdwg.mxu0
    %400 = vmatprep.subr.mxu0 0.0
    %401 = vmatpush1.xpose.msra.mxu0 %v277
    %402 = vmatprep.subr.mxu0 0.0
    %403 = vmatpush1.xpose.msra.mxu0 0.0
    %404 = vmatprep.subr.mxu0 0.0
    %405 = vmatpush1.xpose.msra.mxu0 0.0
    %406 = vmatprep.subr.mxu0 0.0
    %407 = vmatpush1.xpose.msra.mxu0 0.0
    %408 = vmatprep.subr.mxu0 0.0
    %409 = vmatpush1.xpose.msra.mxu0 0.0
    %410 = vmatprep.subr.mxu0 0.0
    %411 = vmatpush1.xpose.msra.mxu0 0.0
    %412 = vmatprep.subr.mxu0 0.0
    %413 = vmatpush1.xpose.msra.mxu0 0.0
    %414 = vmatprep.subr.mxu0 0.0
    %415 = vmatpush1.xpose.msra.mxu0 0.0
    %416 = vmatprep.subr.mxu0 0.0
    %417 = vmatpush1.xpose.msra.mxu0 0.0
    %418 = vmatprep.subr.mxu0 0.0
    %419 = vmatpush1.xpose.msra.mxu0 0.0
    %420 = vmatprep.subr.mxu0 0.0
    %421 = vmatpush1.xpose.msra.mxu0 0.0
    %422 = vmatprep.subr.mxu0 0.0
    %423 = vmatpush1.xpose.msra.mxu0 0.0
    %424 = vmatprep.subr.mxu0 0.0
    %425 = vmatpush1.xpose.msra.mxu0 0.0
    %426 = vmatprep.subr.mxu0 0.0
    %427 = vmatpush1.xpose.msra.mxu0 0.0
    %428 = vmatprep.subr.mxu0 0.0
    %429 = vmatpush1.xpose.msra.mxu0 0.0
    %430 = vmatprep.subr.mxu0 0.0
    %431 = vmatpush1.xpose.msra.mxu0 0.0
    %432 = vmatprep.subr.mxu0 0.0
    %433 = vmatpush1.xpose.msra.mxu0 0.0
    %434 = vmatprep.subr.mxu0 0.0
    %435 = vmatpush1.xpose.msra.mxu0 0.0
    %436 = vmatprep.subr.mxu0 0.0
    %437 = vmatpush1.xpose.msra.mxu0 0.0
    %438 = vmatprep.subr.mxu0 0.0
    %439 = vmatpush1.xpose.msra.mxu0 0.0
    %440 = vmatprep.subr.mxu0 0.0
    %441 = vmatpush1.xpose.msra.mxu0 0.0
    %442 = vmatprep.subr.mxu0 0.0
    %443 = vmatpush1.xpose.msra.mxu0 0.0
    %444 = vmatprep.subr.mxu0 0.0
    %445 = vmatpush1.xpose.msra.mxu0 0.0
    %446 = vmatprep.subr.mxu0 0.0
    %447 = vmatpush1.xpose.msra.mxu0 0.0
    %448 = vmatprep.subr.mxu0 0.0
    %449 = vmatpush1.xpose.msra.mxu0 0.0
    %450 = vmatprep.subr.mxu0 0.0
    %451 = vmatpush1.xpose.msra.mxu0 0.0
    %452 = vmatprep.subr.mxu0 0.0
    %453 = vmatpush1.xpose.msra.mxu0 0.0
    %454 = vmatprep.subr.mxu0 0.0
    %455 = vmatpush1.xpose.msra.mxu0 0.0
    %456 = vmatprep.subr.mxu0 0.0
    %457 = vmatpush1.xpose.msra.mxu0 0.0
    %458 = vmatprep.subr.mxu0 0.0
    %459 = vmatpush1.xpose.msra.mxu0 0.0
    %460 = vmatprep.subr.mxu0 0.0
    %461 = vmatpush1.xpose.msra.mxu0 0.0
    %462 = vmatprep.subr.mxu0 0.0
    %463 = vmatpush1.xpose.msra.mxu0 0.0
    %464 = vmatprep.mubr.f32.mxu0 0.0
    %465 = vmatmul.mubr.f32.gmra.mrb[0].mxu0 %v313
    %v466 = vpop.f32.mrb[0].mxu0
    %v467 = vadd.f32 %v318, %v466
    %v468 = vpop.f32.mrb[0].mxu0
    %469 = vmatprep.mubr.f32.mxu0 0.0
    %470 = vmatmul.mubr.f32.gmra.mrb[0].mxu0 %v314
    %v471 = vpop.f32.mrb[0].mxu0
    %v472 = vadd.f32 %v323, %v471
    %v473 = vpop.f32.mrb[0].mxu0
    %474 = vdwg.mxu0
    %vm475 = vcmask 64512
    %476 = vst.msk [vmem:[%s8] sm:$0xff] %vm475, %v392
    %477 = vst.msk [vmem:[%s8 + $0x8] sm:$0xff] %vm475, %v397
    %478 = vst.msk [vmem:[%s8 + $0x10] sm:$0xff] %vm475, %v467
    %479 = vst.msk [vmem:[%s8 + $0x18] sm:$0xff] %vm475, %v472
    // Predicated region
    $region50: #{tpu_custom_call.1} parent=1 // pred_check
      _
    $region51: #{tpu_custom_call.1} parent=1 // pred_check_branch
      %481 = sbr.rel (0) target = $region53
    $region52: #{tpu_custom_call.1} parent=1 // pred_region
      _
    $region53: #{tpu_custom_call.1} parent=1 // pred_fallthru
      _
    // Predicated region
    $region54: #{tpu_custom_call.1} parent=1 // pred_check
      _
    $region55: #{tpu_custom_call.1} parent=1 // pred_check_branch
      %483 = sbr.rel (0) target = $region57
    $region56: #{tpu_custom_call.1} parent=1 // pred_region
      _
    $region57: #{tpu_custom_call.1} parent=1 // pred_fallthru
      _
    %484 = vsyncpa [#allocation3], 1
    %485 = vsyncpa [#allocation5], 1
    %486 = vsyncpa [#allocation8], 1

</llo_original>
